<compile_context>
chip_gen: v7x
topology: tpu7x:2x2x1
jax: 0.10.0
libtpu: 0.0.40
codegen_flags: <defaults>
</compile_context>

<pallas_src>
import functools

import jax
import jax.numpy as jnp
from jax.experimental import pallas as pl
from jax.experimental.pallas import tpu as pltpu

LANE = 128
SUBLANE = 8


def _round_up(x, m):
    return ((x + m - 1) // m) * m


def _pad2(a, rows, cols):
    r, c = a.shape
    return jnp.pad(a, ((0, rows - r), (0, cols - c)))


def co2_mlp_kernel(xcat_ref, xnum_ref, weff_ref, w1n_ref, b1_ref,
                   w2_ref, b2_ref, w3_ref, b3_ref, o_ref,
                   *, cat_offsets, card_pad, compute_dtype):
    # xcat: (T, n_cat) int32     xnum: (T, NUM_PAD) f32
    # weff: (CARD_PAD, H_PAD)    w1n: (NUM_PAD, H_PAD)   b1: (1, H_PAD)
    # w2:   (H_PAD, H2_PAD)      b2:  (1, H2_PAD)
    # w3:   (H2_PAD, OUT_PAD)    b3:  (1, OUT_PAD)       o: (T, OUT_PAD)
    xcat = xcat_ref[...]
    tile_b = xcat.shape[0]

    # Multi-hot encoding of all categorical codes (embedding lookup == one-hot
    # matmul against the pre-folded table Weff).  7 compares on the VPU.
    lane = jax.lax.broadcasted_iota(jnp.int32, (tile_b, card_pad), 1)
    multihot = jnp.zeros((tile_b, card_pad), dtype=compute_dtype)
    for i, off in enumerate(cat_offsets):
        idx = xcat[:, i:i + 1] + off                     # (T, 1)
        multihot = multihot + (lane == idx).astype(compute_dtype)

    xnum = xnum_ref[...].astype(compute_dtype)

    h1 = (jnp.dot(multihot, weff_ref[...].astype(compute_dtype),
                  preferred_element_type=jnp.float32)
          + jnp.dot(xnum, w1n_ref[...].astype(compute_dtype),
                    preferred_element_type=jnp.float32)
          + b1_ref[...])
    h1 = jnp.maximum(h1, 0.0).astype(compute_dtype)
    # TODO(synk): Dropout(0.3) is identity in eval mode; training-mode masking
    # (pltpu.prng_random_bits) not implemented.
    h2 = jnp.dot(h1, w2_ref[...].astype(compute_dtype),
                 preferred_element_type=jnp.float32) + b2_ref[...]
    h2 = jnp.maximum(h2, 0.0).astype(compute_dtype)
    out = jnp.dot(h2, w3_ref[...].astype(compute_dtype),
                  preferred_element_type=jnp.float32) + b3_ref[...]
    o_ref[...] = out.astype(o_ref.dtype)


def co2_predictor_forward(x_cat, x_num, params, *, block_rows=512,
                          compute_dtype=jnp.float32):
    """Forward pass matching CO2Predictor.forward (eval mode).

    compute_dtype=jnp.bfloat16 is recommended for v6e/v7x serving (f32
    accumulation is kept via preferred_element_type); f32 default keeps the
    numerical check tight.
    """
    embs = params["embeddings"]
    w1, b1 = params["w1"], params["b1"]
    w2, b2 = params["w2"], params["b2"]
    w3, b3 = params["w3"], params["b3"]

    n_cat = len(embs)
    emb_dim = embs[0].shape[1]
    n_num = x_num.shape[1]
    hidden = w1.shape[1]
    hidden2 = w2.shape[1]
    cat_dims = [int(e.shape[0]) for e in embs]
    offsets = [0]
    for d in cat_dims[:-1]:
        offsets.append(offsets[-1] + d)
    total_card = sum(cat_dims)

    hp = jax.lax.Precision.HIGHEST
    # Fold each embedding table through its fc1 row-slice (tiny, done once):
    # emb_i[id] @ w1_slice_i == onehot(id) @ (emb_i @ w1_slice_i).
    weff = jnp.concatenate(
        [jnp.dot(embs[i], w1[i * emb_dim:(i + 1) * emb_dim, :], precision=hp)
         for i in range(n_cat)], axis=0)                 # (total_card, hidden)
    w1_num = w1[n_cat * emb_dim:, :]                     # (n_num, hidden)

    CARD_PAD = _round_up(total_card, LANE)
    H_PAD = _round_up(hidden, LANE)
    H2_PAD = _round_up(hidden2, LANE)
    OUT_PAD = LANE                                       # lane-dense output
    NUM_PAD = _round_up(n_num, SUBLANE)

    f32 = jnp.float32
    weff_p = _pad2(weff.astype(f32), CARD_PAD, H_PAD)
    w1n_p = _pad2(w1_num.astype(f32), NUM_PAD, H_PAD)
    b1_p = _pad2(b1.astype(f32), 1, H_PAD)
    w2_p = _pad2(w2.astype(f32), H_PAD, H2_PAD)
    b2_p = _pad2(b2.astype(f32), 1, H2_PAD)
    w3_p = _pad2(w3.astype(f32), H2_PAD, OUT_PAD)
    b3_p = _pad2(b3.astype(f32), 1, OUT_PAD)
    if compute_dtype != jnp.float32:
        weff_p, w1n_p, w2_p, w3_p = (a.astype(compute_dtype)
                                     for a in (weff_p, w1n_p, w2_p, w3_p))

    B = x_cat.shape[0]
    tile = min(_round_up(block_rows, SUBLANE), _round_up(B, SUBLANE))
    b_pad = _round_up(B, tile)
    n_blocks = b_pad // tile

    xcat_p = jnp.pad(x_cat.astype(jnp.int32), ((0, b_pad - B), (0, 0)))
    xnum_p = jnp.pad(x_num.astype(jnp.float32),
                     ((0, b_pad - B), (0, NUM_PAD - n_num)))

    kernel = functools.partial(
        co2_mlp_kernel,
        cat_offsets=tuple(offsets),
        card_pad=CARD_PAD,
        compute_dtype=compute_dtype,
    )

    flops = 2 * b_pad * (CARD_PAD * H_PAD + NUM_PAD * H_PAD
                         + H_PAD * H2_PAD + H2_PAD * OUT_PAD)
    weight_bytes = sum(int(a.size) * a.dtype.itemsize
                       for a in (weff_p, w1n_p, b1_p, w2_p, b2_p, w3_p, b3_p))
    bytes_accessed = (int(xcat_p.size) * 4 + int(xnum_p.size) * 4
                      + b_pad * OUT_PAD * 4 + weight_bytes)

    out = pl.pallas_call(
        kernel,
        out_shape=jax.ShapeDtypeStruct((b_pad, OUT_PAD), jnp.float32),
        grid=(n_blocks,),
        in_specs=[
            pl.BlockSpec((tile, n_cat), lambda i: (i, 0)),     # streamed
            pl.BlockSpec((tile, NUM_PAD), lambda i: (i, 0)),   # streamed
            pl.BlockSpec(weff_p.shape, lambda i: (0, 0)),      # resident
            pl.BlockSpec(w1n_p.shape, lambda i: (0, 0)),
            pl.BlockSpec(b1_p.shape, lambda i: (0, 0)),
            pl.BlockSpec(w2_p.shape, lambda i: (0, 0)),
            pl.BlockSpec(b2_p.shape, lambda i: (0, 0)),
            pl.BlockSpec(w3_p.shape, lambda i: (0, 0)),
            pl.BlockSpec(b3_p.shape, lambda i: (0, 0)),
        ],
        out_specs=pl.BlockSpec((tile, OUT_PAD), lambda i: (i, 0)),
        compiler_params=pltpu.CompilerParams(
            dimension_semantics=("parallel",)),
        cost_estimate=pl.CostEstimate(
            flops=flops, transcendentals=0, bytes_accessed=bytes_accessed),
    )(xcat_p, xnum_p, weff_p, w1n_p, b1_p, w2_p, b2_p, w3_p, b3_p)

    return out[:B, :1]


def init_params(key, cat_dims, num_numerical, embedding_dim=10, hidden_dim=32):
    keys = jax.random.split(key, len(cat_dims) + 6)
    embeddings = [
        jax.random.normal(keys[i], (dim, embedding_dim), jnp.float32) * 0.1
        for i, dim in enumerate(cat_dims)
    ]
    input_dim = len(cat_dims) * embedding_dim + num_numerical
    k = len(cat_dims)
    w1 = jax.random.normal(keys[k + 0], (input_dim, hidden_dim), jnp.float32) * 0.05
    b1 = jax.random.normal(keys[k + 1], (1, hidden_dim), jnp.float32) * 0.01
    w2 = jax.random.normal(keys[k + 2], (hidden_dim, hidden_dim // 2), jnp.float32) * 0.05
    b2 = jax.random.normal(keys[k + 3], (1, hidden_dim // 2), jnp.float32) * 0.01
    w3 = jax.random.normal(keys[k + 4], (hidden_dim // 2, 1), jnp.float32) * 0.05
    b3 = jax.random.normal(keys[k + 5], (1, 1), jnp.float32) * 0.01
    return {
        "embeddings": embeddings,
        "w1": w1, "b1": b1,
        "w2": w2, "b2": b2,
        "w3": w3, "b3": b3,
    }


if __name__ == "__main__":
    key = jax.random.PRNGKey(0)
    k_param, k_cat, k_num = jax.random.split(key, 3)

    # 7 categorical columns (brand, model, car_class, range, fuel_type, hybrid,
    # grbx_type_ratios) with small synthetic cardinalities + 6 numerical cols.
    cat_dims = [5, 8, 4, 3, 3, 2, 6]
    num_numerical = 6
    batch = 8
    embedding_dim = 10
    hidden_dim = 32

    params = init_params(k_param, cat_dims, num_numerical, embedding_dim, hidden_dim)

    cat_keys = jax.random.split(k_cat, len(cat_dims))
    x_cat = jnp.stack(
        [jax.random.randint(cat_keys[i], (batch,), 0, dim)
         for i, dim in enumerate(cat_dims)],
        axis=1,
    )  # (B, 7) int32
    x_num = jax.random.normal(k_num, (batch, num_numerical), jnp.float32)  # (B, 6)

    fwd = jax.jit(co2_predictor_forward)
    out = fwd(x_cat, x_num, params)
    out = jax.block_until_ready(out)

    # Reference in plain JAX (eval-mode dropout == identity).
    hp = jax.lax.Precision.HIGHEST
    embedded = jnp.concatenate(
        [params["embeddings"][i][x_cat[:, i]] for i in range(len(cat_dims))], axis=1)
    x = jnp.concatenate([embedded, x_num], axis=1)
    h1 = jnp.maximum(jnp.dot(x, params["w1"], precision=hp) + params["b1"], 0.0)
    h2 = jnp.maximum(jnp.dot(h1, params["w2"], precision=hp) + params["b2"], 0.0)
    ref = jnp.dot(h2, params["w3"], precision=hp) + params["b3"]

    assert out.shape == (batch, 1), out.shape
    err = jnp.max(jnp.abs(out - ref))
    assert jnp.allclose(out, ref, atol=1e-4, rtol=1e-4), err
    print("KERNEL_OK")
</pallas_src>

<mosaic_0001>
module attributes {stable_mosaic.version = 11 : i64} {
  func.func @co2_mlp_kernel(%arg0: i32, %arg1: memref<8x7xi32, #tpu.memory_space<vmem>>, %arg2: memref<8x8xf32, #tpu.memory_space<vmem>>, %arg3: memref<128x128xf32, #tpu.memory_space<vmem>>, %arg4: memref<8x128xf32, #tpu.memory_space<vmem>>, %arg5: memref<1x128xf32, #tpu.memory_space<vmem>>, %arg6: memref<128x128xf32, #tpu.memory_space<vmem>>, %arg7: memref<1x128xf32, #tpu.memory_space<vmem>>, %arg8: memref<128x128xf32, #tpu.memory_space<vmem>>, %arg9: memref<1x128xf32, #tpu.memory_space<vmem>>, %arg10: memref<8x128xf32, #tpu.memory_space<vmem>>) attributes {dimension_semantics = [#tpu.dimension_semantics<parallel>], iteration_bounds = array<i64: 1>, scalar_prefetch = 0 : i64, scratch_operands = 0 : i64, tpu.core_type = #tpu.core_type<tc>, window_params = [{transform_indices = @transform_0, window_bounds = array<i64: 8, 7>}, {transform_indices = @transform_1, window_bounds = array<i64: 8, 8>}, {pipeline_mode = #tpu.pipeline_mode<synchronous>, transform_indices = @transform_2, window_bounds = array<i64: 128, 128>}, {pipeline_mode = #tpu.pipeline_mode<synchronous>, transform_indices = @transform_3, window_bounds = array<i64: 8, 128>}, {pipeline_mode = #tpu.pipeline_mode<synchronous>, transform_indices = @transform_4, window_bounds = array<i64: 1, 128>}, {pipeline_mode = #tpu.pipeline_mode<synchronous>, transform_indices = @transform_5, window_bounds = array<i64: 128, 128>}, {pipeline_mode = #tpu.pipeline_mode<synchronous>, transform_indices = @transform_6, window_bounds = array<i64: 1, 128>}, {pipeline_mode = #tpu.pipeline_mode<synchronous>, transform_indices = @transform_7, window_bounds = array<i64: 128, 128>}, {pipeline_mode = #tpu.pipeline_mode<synchronous>, transform_indices = @transform_8, window_bounds = array<i64: 1, 128>}, {transform_indices = @transform_9, window_bounds = array<i64: 8, 128>}]} {
    %c0 = arith.constant 0 : index
    %c0_0 = arith.constant 0 : index
    %0 = vector.load %arg1[%c0, %c0_0] : memref<8x7xi32, #tpu.memory_space<vmem>>, vector<8x7xi32>
    %1 = tpu.iota {dimensions = array<i32: 1>} : vector<8x128xi32>
    %cst = arith.constant 0.000000e+00 : f32
    %2 = vector.broadcast %cst : f32 to vector<8x128xf32>
    %3 = vector.extract_strided_slice %0 {offsets = [0, 0], sizes = [8, 1], strides = [1, 1]} : vector<8x7xi32> to vector<8x1xi32>
    %c0_i32 = arith.constant 0 : i32
    %4 = vector.broadcast %c0_i32 : i32 to vector<8x1xi32>
    %5 = arith.addi %3, %4 : vector<8x1xi32>
    %6 = vector.broadcast %5 : vector<8x1xi32> to vector<8x128xi32>
    %7 = arith.cmpi eq, %1, %6 : vector<8x128xi32>
    %8 = arith.extui %7 : vector<8x128xi1> to vector<8x128xi32>
    %9 = arith.sitofp %8 : vector<8x128xi32> to vector<8x128xf32>
    %10 = arith.addf %2, %9 : vector<8x128xf32>
    %11 = vector.extract_strided_slice %0 {offsets = [0, 1], sizes = [8, 1], strides = [1, 1]} : vector<8x7xi32> to vector<8x1xi32>
    %c5_i32 = arith.constant 5 : i32
    %12 = vector.broadcast %c5_i32 : i32 to vector<8x1xi32>
    %13 = arith.addi %11, %12 : vector<8x1xi32>
    %14 = vector.broadcast %13 : vector<8x1xi32> to vector<8x128xi32>
    %15 = arith.cmpi eq, %1, %14 : vector<8x128xi32>
    %16 = arith.extui %15 : vector<8x128xi1> to vector<8x128xi32>
    %17 = arith.sitofp %16 : vector<8x128xi32> to vector<8x128xf32>
    %18 = arith.addf %10, %17 : vector<8x128xf32>
    %19 = vector.extract_strided_slice %0 {offsets = [0, 2], sizes = [8, 1], strides = [1, 1]} : vector<8x7xi32> to vector<8x1xi32>
    %c13_i32 = arith.constant 13 : i32
    %20 = vector.broadcast %c13_i32 : i32 to vector<8x1xi32>
    %21 = arith.addi %19, %20 : vector<8x1xi32>
    %22 = vector.broadcast %21 : vector<8x1xi32> to vector<8x128xi32>
    %23 = arith.cmpi eq, %1, %22 : vector<8x128xi32>
    %24 = arith.extui %23 : vector<8x128xi1> to vector<8x128xi32>
    %25 = arith.sitofp %24 : vector<8x128xi32> to vector<8x128xf32>
    %26 = arith.addf %18, %25 : vector<8x128xf32>
    %27 = vector.extract_strided_slice %0 {offsets = [0, 3], sizes = [8, 1], strides = [1, 1]} : vector<8x7xi32> to vector<8x1xi32>
    %c17_i32 = arith.constant 17 : i32
    %28 = vector.broadcast %c17_i32 : i32 to vector<8x1xi32>
    %29 = arith.addi %27, %28 : vector<8x1xi32>
    %30 = vector.broadcast %29 : vector<8x1xi32> to vector<8x128xi32>
    %31 = arith.cmpi eq, %1, %30 : vector<8x128xi32>
    %32 = arith.extui %31 : vector<8x128xi1> to vector<8x128xi32>
    %33 = arith.sitofp %32 : vector<8x128xi32> to vector<8x128xf32>
    %34 = arith.addf %26, %33 : vector<8x128xf32>
    %35 = vector.extract_strided_slice %0 {offsets = [0, 4], sizes = [8, 1], strides = [1, 1]} : vector<8x7xi32> to vector<8x1xi32>
    %c20_i32 = arith.constant 20 : i32
    %36 = vector.broadcast %c20_i32 : i32 to vector<8x1xi32>
    %37 = arith.addi %35, %36 : vector<8x1xi32>
    %38 = vector.broadcast %37 : vector<8x1xi32> to vector<8x128xi32>
    %39 = arith.cmpi eq, %1, %38 : vector<8x128xi32>
    %40 = arith.extui %39 : vector<8x128xi1> to vector<8x128xi32>
    %41 = arith.sitofp %40 : vector<8x128xi32> to vector<8x128xf32>
    %42 = arith.addf %34, %41 : vector<8x128xf32>
    %43 = vector.extract_strided_slice %0 {offsets = [0, 5], sizes = [8, 1], strides = [1, 1]} : vector<8x7xi32> to vector<8x1xi32>
    %c23_i32 = arith.constant 23 : i32
    %44 = vector.broadcast %c23_i32 : i32 to vector<8x1xi32>
    %45 = arith.addi %43, %44 : vector<8x1xi32>
    %46 = vector.broadcast %45 : vector<8x1xi32> to vector<8x128xi32>
    %47 = arith.cmpi eq, %1, %46 : vector<8x128xi32>
    %48 = arith.extui %47 : vector<8x128xi1> to vector<8x128xi32>
    %49 = arith.sitofp %48 : vector<8x128xi32> to vector<8x128xf32>
    %50 = arith.addf %42, %49 : vector<8x128xf32>
    %51 = vector.extract_strided_slice %0 {offsets = [0, 6], sizes = [8, 1], strides = [1, 1]} : vector<8x7xi32> to vector<8x1xi32>
    %c25_i32 = arith.constant 25 : i32
    %52 = vector.broadcast %c25_i32 : i32 to vector<8x1xi32>
    %53 = arith.addi %51, %52 : vector<8x1xi32>
    %54 = vector.broadcast %53 : vector<8x1xi32> to vector<8x128xi32>
    %55 = arith.cmpi eq, %1, %54 : vector<8x128xi32>
    %56 = arith.extui %55 : vector<8x128xi1> to vector<8x128xi32>
    %57 = arith.sitofp %56 : vector<8x128xi32> to vector<8x128xf32>
    %58 = arith.addf %50, %57 : vector<8x128xf32>
    %c0_1 = arith.constant 0 : index
    %c0_2 = arith.constant 0 : index
    %59 = vector.load %arg2[%c0_1, %c0_2] : memref<8x8xf32, #tpu.memory_space<vmem>>, vector<8x8xf32>
    %c0_3 = arith.constant 0 : index
    %c0_4 = arith.constant 0 : index
    %60 = vector.load %arg3[%c0_3, %c0_4] : memref<128x128xf32, #tpu.memory_space<vmem>>, vector<128x128xf32>
    %cst_5 = arith.constant dense<0.000000e+00> : vector<8x128xf32>
    %61 = tpu.matmul %58, %60, %cst_5 {dimension_numbers = #tpu.dot_dimension_numbers<[1], [0], [0], [1], [0, 0, 1, 1], [], []>} : vector<8x128xf32>, vector<128x128xf32>, vector<8x128xf32> -> vector<8x128xf32>
    %c0_6 = arith.constant 0 : index
    %c0_7 = arith.constant 0 : index
    %62 = vector.load %arg4[%c0_6, %c0_7] : memref<8x128xf32, #tpu.memory_space<vmem>>, vector<8x128xf32>
    %cst_8 = arith.constant dense<0.000000e+00> : vector<8x128xf32>
    %63 = tpu.matmul %59, %62, %cst_8 {dimension_numbers = #tpu.dot_dimension_numbers<[1], [0], [0], [1], [0, 0, 1, 1], [], []>} : vector<8x8xf32>, vector<8x128xf32>, vector<8x128xf32> -> vector<8x128xf32>
    %64 = arith.addf %61, %63 : vector<8x128xf32>
    %c0_9 = arith.constant 0 : index
    %c0_10 = arith.constant 0 : index
    %65 = vector.load %arg5[%c0_9, %c0_10] : memref<1x128xf32, #tpu.memory_space<vmem>>, vector<1x128xf32>
    %66 = vector.broadcast %65 : vector<1x128xf32> to vector<8x128xf32>
    %67 = arith.addf %64, %66 : vector<8x128xf32>
    %cst_11 = arith.constant 0.000000e+00 : f32
    %68 = vector.broadcast %cst_11 : f32 to vector<8x128xf32>
    %69 = arith.maximumf %67, %68 : vector<8x128xf32>
    %c0_12 = arith.constant 0 : index
    %c0_13 = arith.constant 0 : index
    %70 = vector.load %arg6[%c0_12, %c0_13] : memref<128x128xf32, #tpu.memory_space<vmem>>, vector<128x128xf32>
    %cst_14 = arith.constant dense<0.000000e+00> : vector<8x128xf32>
    %71 = tpu.matmul %69, %70, %cst_14 {dimension_numbers = #tpu.dot_dimension_numbers<[1], [0], [0], [1], [0, 0, 1, 1], [], []>} : vector<8x128xf32>, vector<128x128xf32>, vector<8x128xf32> -> vector<8x128xf32>
    %c0_15 = arith.constant 0 : index
    %c0_16 = arith.constant 0 : index
    %72 = vector.load %arg7[%c0_15, %c0_16] : memref<1x128xf32, #tpu.memory_space<vmem>>, vector<1x128xf32>
    %73 = vector.broadcast %72 : vector<1x128xf32> to vector<8x128xf32>
    %74 = arith.addf %71, %73 : vector<8x128xf32>
    %cst_17 = arith.constant 0.000000e+00 : f32
    %75 = vector.broadcast %cst_17 : f32 to vector<8x128xf32>
    %76 = arith.maximumf %74, %75 : vector<8x128xf32>
    %c0_18 = arith.constant 0 : index
    %c0_19 = arith.constant 0 : index
    %77 = vector.load %arg8[%c0_18, %c0_19] : memref<128x128xf32, #tpu.memory_space<vmem>>, vector<128x128xf32>
    %cst_20 = arith.constant dense<0.000000e+00> : vector<8x128xf32>
    %78 = tpu.matmul %76, %77, %cst_20 {dimension_numbers = #tpu.dot_dimension_numbers<[1], [0], [0], [1], [0, 0, 1, 1], [], []>} : vector<8x128xf32>, vector<128x128xf32>, vector<8x128xf32> -> vector<8x128xf32>
    %c0_21 = arith.constant 0 : index
    %c0_22 = arith.constant 0 : index
    %79 = vector.load %arg9[%c0_21, %c0_22] : memref<1x128xf32, #tpu.memory_space<vmem>>, vector<1x128xf32>
    %80 = vector.broadcast %79 : vector<1x128xf32> to vector<8x128xf32>
    %81 = arith.addf %78, %80 : vector<8x128xf32>
    %c0_23 = arith.constant 0 : index
    %c0_24 = arith.constant 0 : index
    %82 = vector.load %arg10[%c0_23, %c0_24] : memref<8x128xf32, #tpu.memory_space<vmem>>, vector<8x128xf32>
    tpu.vector_store %arg10[%c0_23, %c0_24], %81 {strides = array<i32>} : memref<8x128xf32, #tpu.memory_space<vmem>>, vector<8x128xf32>,
    return
  }
  func.func @transform_0(%arg0: i32) -> (i32, i32) {
    %c0_i32 = arith.constant 0 : i32
    %c0_i32_0 = arith.constant 0 : i32
    return %arg0, %c0_i32 : i32, i32
  }
  func.func @transform_1(%arg0: i32) -> (i32, i32) {
    %c0_i32 = arith.constant 0 : i32
    %c0_i32_0 = arith.constant 0 : i32
    return %arg0, %c0_i32 : i32, i32
  }
  func.func @transform_2(%arg0: i32) -> (i32, i32) {
    %c0_i32 = arith.constant 0 : i32
    %c0_i32_0 = arith.constant 0 : i32
    %c0_i32_1 = arith.constant 0 : i32
    return %c0_i32, %c0_i32_0 : i32, i32
  }
  func.func @transform_3(%arg0: i32) -> (i32, i32) {
    %c0_i32 = arith.constant 0 : i32
    %c0_i32_0 = arith.constant 0 : i32
    %c0_i32_1 = arith.constant 0 : i32
    return %c0_i32, %c0_i32_0 : i32, i32
  }
  func.func @transform_4(%arg0: i32) -> (i32, i32) {
    %c0_i32 = arith.constant 0 : i32
    %c0_i32_0 = arith.constant 0 : i32
    %c0_i32_1 = arith.constant 0 : i32
    return %c0_i32, %c0_i32_0 : i32, i32
  }
  func.func @transform_5(%arg0: i32) -> (i32, i32) {
    %c0_i32 = arith.constant 0 : i32
    %c0_i32_0 = arith.constant 0 : i32
    %c0_i32_1 = arith.constant 0 : i32
    return %c0_i32, %c0_i32_0 : i32, i32
  }
  func.func @transform_6(%arg0: i32) -> (i32, i32) {
    %c0_i32 = arith.constant 0 : i32
    %c0_i32_0 = arith.constant 0 : i32
    %c0_i32_1 = arith.constant 0 : i32
    return %c0_i32, %c0_i32_0 : i32, i32
  }
  func.func @transform_7(%arg0: i32) -> (i32, i32) {
    %c0_i32 = arith.constant 0 : i32
    %c0_i32_0 = arith.constant 0 : i32
    %c0_i32_1 = arith.constant 0 : i32
    return %c0_i32, %c0_i32_0 : i32, i32
  }
  func.func @transform_8(%arg0: i32) -> (i32, i32) {
    %c0_i32 = arith.constant 0 : i32
    %c0_i32_0 = arith.constant 0 : i32
    %c0_i32_1 = arith.constant 0 : i32
    return %c0_i32, %c0_i32_0 : i32, i32
  }
  func.func @transform_9(%arg0: i32) -> (i32, i32) {
    %c0_i32 = arith.constant 0 : i32
    %c0_i32_0 = arith.constant 0 : i32
    return %arg0, %c0_i32 : i32, i32
  }
}

</mosaic_0001>

<llo_original>
// kernel: co2_predictor_forward.1
$region0: #{co2_predictor_forward.1}
  #allocation0 [shape = 'u32[]', space=smem, size = 0x4, offset = 0x4, fixed_abs, tag = 'smem constant byte address 0x4 - core index']
  #allocation1 [shape = 'u32[144,128]{1,0:T(1,128)}', space=vmem, size = 0x12000, scoped, tag = 'internal scratch']
  %s0 = inlined_call_operand.vmem [shape: s32[8,7], index: 0, kind: input, shape index: {}]
  %s1 = inlined_call_operand.vmem [shape: f32[8,8], index: 1, kind: input, shape index: {}]
  %s2 = inlined_call_operand.vmem [shape: f32[128,128], index: 2, kind: input, shape index: {}]
  %s3 = inlined_call_operand.vmem [shape: f32[8,128], index: 3, kind: input, shape index: {}]
  %s4 = inlined_call_operand.vmem [shape: f32[1,128], index: 4, kind: input, shape index: {}]
  %s5 = inlined_call_operand.vmem [shape: f32[128,128], index: 5, kind: input, shape index: {}]
  %s6 = inlined_call_operand.vmem [shape: f32[1,128], index: 6, kind: input, shape index: {}]
  %s7 = inlined_call_operand.vmem [shape: f32[128,128], index: 7, kind: input, shape index: {}]
  %s8 = inlined_call_operand.vmem [shape: f32[1,128], index: 8, kind: input, shape index: {}]
  %s9 = inlined_call_operand.vmem [shape: f32[8,128], index: 9, kind: output, shape index: {}]
  %s10 = sld [smem:[#allocation0]]
  $region46: #{co2_predictor_forward.1} parent=0
    _
  %s12 = ssub.s32 1, %s10
  %s13 = scalar_select 0, %s12, %s10
  // Predicated region
  $region2: #{co2_predictor_forward.1} parent=0 // pred_check
    _
  $region3: #{co2_predictor_forward.1} parent=0 // pred_check_branch
    %15 = sbr.rel (0) target = $region5
  $region4: #{co2_predictor_forward.1} parent=0 // pred_region
    _
  $region5: #{co2_predictor_forward.1} parent=0 // pred_fallthru
    _
  // Predicated region
  $region6: #{co2_predictor_forward.1} parent=0 // pred_check
    _
  $region7: #{co2_predictor_forward.1} parent=0 // pred_check_branch
    %17 = sbr.rel (0) target = $region9
  $region8: #{co2_predictor_forward.1} parent=0 // pred_region
    _
  $region9: #{co2_predictor_forward.1} parent=0 // pred_fallthru
    _
  // Predicated region
  $region10: #{co2_predictor_forward.1} parent=0 // pred_check
    _
  $region11: #{co2_predictor_forward.1} parent=0 // pred_check_branch
    %19 = sbr.rel (0) target = $region13
  $region12: #{co2_predictor_forward.1} parent=0 // pred_region
    _
  $region13: #{co2_predictor_forward.1} parent=0 // pred_fallthru
    _
  // Predicated region
  $region14: #{co2_predictor_forward.1} parent=0 // pred_check
    _
  $region15: #{co2_predictor_forward.1} parent=0 // pred_check_branch
    %21 = sbr.rel (0) target = $region17
  $region16: #{co2_predictor_forward.1} parent=0 // pred_region
    _
  $region17: #{co2_predictor_forward.1} parent=0 // pred_fallthru
    _
  // Predicated region
  $region18: #{co2_predictor_forward.1} parent=0 // pred_check
    _
  $region19: #{co2_predictor_forward.1} parent=0 // pred_check_branch
    %23 = sbr.rel (0) target = $region21
  $region20: #{co2_predictor_forward.1} parent=0 // pred_region
    _
  $region21: #{co2_predictor_forward.1} parent=0 // pred_fallthru
    _
  // Predicated region
  $region22: #{co2_predictor_forward.1} parent=0 // pred_check
    _
  $region23: #{co2_predictor_forward.1} parent=0 // pred_check_branch
    %25 = sbr.rel (0) target = $region25
  $region24: #{co2_predictor_forward.1} parent=0 // pred_region
    _
  $region25: #{co2_predictor_forward.1} parent=0 // pred_fallthru
    _
  // Predicated region
  $region26: #{co2_predictor_forward.1} parent=0 // pred_check
    _
  $region27: #{co2_predictor_forward.1} parent=0 // pred_check_branch
    %27 = sbr.rel (0) target = $region29
  $region28: #{co2_predictor_forward.1} parent=0 // pred_region
    _
  $region29: #{co2_predictor_forward.1} parent=0 // pred_fallthru
    _
  // Predicated region
  $region30: #{co2_predictor_forward.1} parent=0 // pred_check
    _
  $region31: #{co2_predictor_forward.1} parent=0 // pred_check_branch
    %29 = sbr.rel (0) target = $region33
  $region32: #{co2_predictor_forward.1} parent=0 // pred_region
    _
  $region33: #{co2_predictor_forward.1} parent=0 // pred_fallthru
    _
  // Predicated region
  $region34: #{co2_predictor_forward.1} parent=0 // pred_check
    _
  $region35: #{co2_predictor_forward.1} parent=0 // pred_check_branch
    %31 = sbr.rel (0) target = $region37
  $region36: #{co2_predictor_forward.1} parent=0 // pred_region
    _
  $region37: #{co2_predictor_forward.1} parent=0 // pred_fallthru
    _
  %v32 = vld [vmem:[%s0] sm:$0xff]
  %v33 = vlaneseq
  %v34 = vand.u32 %v33, 127
  %35 = vset.pattern.permute.xlu0 0
  %36 = vperm.xlu0 %35, %v32
  %v37 = vpop.permute.xlu0 %36
  %vm38 = vcmp.eq.s32.totalorder %v34, %v37
  %v39 = vsel %vm38, 1, 0
  %v40 = vcvt.s32.f32 %v39
  %v41 = vadd.f32 %v40, 0.0
  %v42 = vadd.s32 %v32, 5
  %43 = vset.pattern.permute.xlu0 1
  %44 = vperm.xlu0 %43, %v42
  %v45 = vpop.permute.xlu0 %44
  %vm46 = vcmp.eq.s32.totalorder %v34, %v45
  %v47 = vsel %vm46, 1, 0
  %v48 = vcvt.s32.f32 %v47
  %v49 = vadd.f32 %v41, %v48
  %v50 = vadd.s32 %v32, 13
  %51 = vset.pattern.permute.xlu0 2
  %52 = vperm.xlu0 %51, %v50
  %v53 = vpop.permute.xlu0 %52
  %vm54 = vcmp.eq.s32.totalorder %v34, %v53
  %v55 = vsel %vm54, 1, 0
  %v56 = vcvt.s32.f32 %v55
  %v57 = vadd.f32 %v49, %v56
  %v58 = vadd.s32 %v32, 17
  %59 = vset.pattern.permute.xlu0 3
  %60 = vperm.xlu0 %59, %v58
  %v61 = vpop.permute.xlu0 %60
  %vm62 = vcmp.eq.s32.totalorder %v34, %v61
  %v63 = vsel %vm62, 1, 0
  %v64 = vcvt.s32.f32 %v63
  %v65 = vadd.f32 %v57, %v64
  %v66 = vadd.s32 %v32, 20
  %67 = vset.pattern.permute.xlu0 4
  %68 = vperm.xlu0 %67, %v66
  %v69 = vpop.permute.xlu0 %68
  %vm70 = vcmp.eq.s32.totalorder %v34, %v69
  %v71 = vsel %vm70, 1, 0
  %v72 = vcvt.s32.f32 %v71
  %v73 = vadd.f32 %v65, %v72
  %v74 = vadd.s32 %v32, 23
  %75 = vset.pattern.permute.xlu0 5
  %76 = vperm.xlu0 %75, %v74
  %v77 = vpop.permute.xlu0 %76
  %vm78 = vcmp.eq.s32.totalorder %v34, %v77
  %v79 = vsel %vm78, 1, 0
  %v80 = vcvt.s32.f32 %v79
  %v81 = vadd.f32 %v73, %v80
  %v82 = vadd.s32 %v32, 25
  %83 = vset.pattern.permute.xlu0 6
  %84 = vperm.xlu0 %83, %v82
  %v85 = vpop.permute.xlu0 %84
  %vm86 = vcmp.eq.s32.totalorder %v34, %v85
  %v87 = vsel %vm86, 1, 0
  %v88 = vcvt.s32.f32 %v87
  %v89 = vadd.f32 %v81, %v88
  %v90 = vld [vmem:[%s1] sm:$0xff]
  %v91 = vld [vmem:[%s2] sm:$0xff]
  %v92 = vld [vmem:[%s2 + $0x8] sm:$0xff]
  %v93 = vld [vmem:[%s2 + $0x10] sm:$0xff]
  %v94 = vld [vmem:[%s2 + $0x18] sm:$0xff]
  %v95 = vld [vmem:[%s2 + $0x20] sm:$0xff]
  %v96 = vld [vmem:[%s2 + $0x28] sm:$0xff]
  %v97 = vld [vmem:[%s2 + $0x30] sm:$0xff]
  %v98 = vld [vmem:[%s2 + $0x38] sm:$0xff]
  %v99 = vld [vmem:[%s2 + $0x40] sm:$0xff]
  %v100 = vld [vmem:[%s2 + $0x48] sm:$0xff]
  %v101 = vld [vmem:[%s2 + $0x50] sm:$0xff]
  %v102 = vld [vmem:[%s2 + $0x58] sm:$0xff]
  %v103 = vld [vmem:[%s2 + $0x60] sm:$0xff]
  %v104 = vld [vmem:[%s2 + $0x68] sm:$0xff]
  %v105 = vld [vmem:[%s2 + $0x70] sm:$0xff]
  %v106 = vld [vmem:[%s2 + $0x78] sm:$0xff]
  %v107 = vld [vmem:[%s3] sm:$0xff]
  %vm108 = vcmask 64512
  %v110 = vsel %vm108, %v90, 0
  %112 = vmatprep.subr.mxu0 0.0
  %113 = vmatpush1.msra.mxu0 %v107
  %114 = vmatprep.subr.mxu0 0.0
  %115 = vmatpush1.msra.mxu0 0.0
  %116 = vmatprep.subr.mxu0 0.0
  %117 = vmatpush1.msra.mxu0 0.0
  %118 = vmatprep.subr.mxu0 0.0
  %119 = vmatpush1.msra.mxu0 0.0
  %120 = vmatprep.subr.mxu0 0.0
  %121 = vmatpush1.msra.mxu0 0.0
  %122 = vmatprep.subr.mxu0 0.0
  %123 = vmatpush1.msra.mxu0 0.0
  %124 = vmatprep.subr.mxu0 0.0
  %125 = vmatpush1.msra.mxu0 0.0
  %126 = vmatprep.subr.mxu0 0.0
  %127 = vmatpush1.msra.mxu0 0.0
  %128 = vmatprep.subr.mxu0 0.0
  %129 = vmatpush1.msra.mxu0 0.0
  %130 = vmatprep.subr.mxu0 0.0
  %131 = vmatpush1.msra.mxu0 0.0
  %132 = vmatprep.subr.mxu0 0.0
  %133 = vmatpush1.msra.mxu0 0.0
  %134 = vmatprep.subr.mxu0 0.0
  %135 = vmatpush1.msra.mxu0 0.0
  %136 = vmatprep.subr.mxu0 0.0
  %137 = vmatpush1.msra.mxu0 0.0
  %138 = vmatprep.subr.mxu0 0.0
  %139 = vmatpush1.msra.mxu0 0.0
  %140 = vmatprep.subr.mxu0 0.0
  %141 = vmatpush1.msra.mxu0 0.0
  %142 = vmatprep.subr.mxu0 0.0
  %143 = vmatpush1.msra.mxu0 0.0
  %144 = vmatprep.subr.mxu0 0.0
  %145 = vmatpush1.msra.mxu0 0.0
  %146 = vmatprep.subr.mxu0 0.0
  %147 = vmatpush1.msra.mxu0 0.0
  %148 = vmatprep.subr.mxu0 0.0
  %149 = vmatpush1.msra.mxu0 0.0
  %150 = vmatprep.subr.mxu0 0.0
  %151 = vmatpush1.msra.mxu0 0.0
  %152 = vmatprep.subr.mxu0 0.0
  %153 = vmatpush1.msra.mxu0 0.0
  %154 = vmatprep.subr.mxu0 0.0
  %155 = vmatpush1.msra.mxu0 0.0
  %156 = vmatprep.subr.mxu0 0.0
  %157 = vmatpush1.msra.mxu0 0.0
  %158 = vmatprep.subr.mxu0 0.0
  %159 = vmatpush1.msra.mxu0 0.0
  %160 = vmatprep.subr.mxu0 0.0
  %161 = vmatpush1.msra.mxu0 0.0
  %162 = vmatprep.subr.mxu0 0.0
  %163 = vmatpush1.msra.mxu0 0.0
  %164 = vmatprep.subr.mxu0 0.0
  %165 = vmatpush1.msra.mxu0 0.0
  %166 = vmatprep.subr.mxu0 0.0
  %167 = vmatpush1.msra.mxu0 0.0
  %168 = vmatprep.subr.mxu0 0.0
  %169 = vmatpush1.msra.mxu0 0.0
  %170 = vmatprep.subr.mxu0 0.0
  %171 = vmatpush1.msra.mxu0 0.0
  %172 = vmatprep.subr.mxu0 0.0
  %173 = vmatpush1.msra.mxu0 0.0
  %174 = vmatprep.subr.mxu0 0.0
  %175 = vmatpush1.msra.mxu0 0.0
  %176 = vmatprep.mubr.f32.mxu0 0.0
  %177 = vmatmul.mubr.f32.gmra.mrb[0].mxu0 %v110
  %v178 = vpop.f32.mrb[0].mxu0
  %v179 = vadd.f32 0.0, %v178
  %v180 = vpop.f32.mrb[0].mxu0
  %181 = vdwg.mxu0
  %182 = vmatprep.subr.mxu0 0.0
  %183 = vmatpush1.msra.mxu0 %v91
  %184 = vmatprep.subr.mxu0 0.0
  %185 = vmatpush1.msra.mxu0 %v92
  %186 = vmatprep.subr.mxu0 0.0
  %187 = vmatpush1.msra.mxu0 %v93
  %188 = vmatprep.subr.mxu0 0.0
  %189 = vmatpush1.msra.mxu0 %v94
  %190 = vmatprep.subr.mxu0 0.0
  %191 = vmatpush1.msra.mxu0 %v95
  %192 = vmatprep.subr.mxu0 0.0
  %193 = vmatpush1.msra.mxu0 %v96
  %194 = vmatprep.subr.mxu0 0.0
  %195 = vmatpush1.msra.mxu0 %v97
  %196 = vmatprep.subr.mxu0 0.0
  %197 = vmatpush1.msra.mxu0 %v98
  %198 = vmatprep.subr.mxu0 0.0
  %199 = vmatpush1.msra.mxu0 %v99
  %200 = vmatprep.subr.mxu0 0.0
  %201 = vmatpush1.msra.mxu0 %v100
  %202 = vmatprep.subr.mxu0 0.0
  %203 = vmatpush1.msra.mxu0 %v101
  %204 = vmatprep.subr.mxu0 0.0
  %205 = vmatpush1.msra.mxu0 %v102
  %206 = vmatprep.subr.mxu0 0.0
  %207 = vmatpush1.msra.mxu0 %v103
  %208 = vmatprep.subr.mxu0 0.0
  %209 = vmatpush1.msra.mxu0 %v104
  %210 = vmatprep.subr.mxu0 0.0
  %211 = vmatpush1.msra.mxu0 %v105
  %212 = vmatprep.subr.mxu0 0.0
  %213 = vmatpush1.msra.mxu0 %v106
  %214 = vmatprep.subr.mxu0 0.0
  %215 = vmatpush1.msra.mxu0 0.0
  %216 = vmatprep.subr.mxu0 0.0
  %217 = vmatpush1.msra.mxu0 0.0
  %218 = vmatprep.subr.mxu0 0.0
  %219 = vmatpush1.msra.mxu0 0.0
  %220 = vmatprep.subr.mxu0 0.0
  %221 = vmatpush1.msra.mxu0 0.0
  %222 = vmatprep.subr.mxu0 0.0
  %223 = vmatpush1.msra.mxu0 0.0
  %224 = vmatprep.subr.mxu0 0.0
  %225 = vmatpush1.msra.mxu0 0.0
  %226 = vmatprep.subr.mxu0 0.0
  %227 = vmatpush1.msra.mxu0 0.0
  %228 = vmatprep.subr.mxu0 0.0
  %229 = vmatpush1.msra.mxu0 0.0
  %230 = vmatprep.subr.mxu0 0.0
  %231 = vmatpush1.msra.mxu0 0.0
  %232 = vmatprep.subr.mxu0 0.0
  %233 = vmatpush1.msra.mxu0 0.0
  %234 = vmatprep.subr.mxu0 0.0
  %235 = vmatpush1.msra.mxu0 0.0
  %236 = vmatprep.subr.mxu0 0.0
  %237 = vmatpush1.msra.mxu0 0.0
  %238 = vmatprep.subr.mxu0 0.0
  %239 = vmatpush1.msra.mxu0 0.0
  %240 = vmatprep.subr.mxu0 0.0
  %241 = vmatpush1.msra.mxu0 0.0
  %242 = vmatprep.subr.mxu0 0.0
  %243 = vmatpush1.msra.mxu0 0.0
  %244 = vmatprep.subr.mxu0 0.0
  %245 = vmatpush1.msra.mxu0 0.0
  %246 = vmatprep.mubr.f32.mxu0 0.0
  %247 = vmatmul.mubr.f32.gmra.mrb[0].mxu0 %v89
  %v248 = vpop.f32.mrb[0].mxu0
  %v249 = vadd.f32 %v179, %v248
  %v250 = vpop.f32.mrb[0].mxu0
  %251 = vdwg.mxu0
  %v252 = vld [vmem:[%s4] sm:$0x1]
  %v254 = vlaneseq
  %v255 = vshrl.u32 %v254, 7
  %v256 = vsub.s32 0, %v255
  %v257 = vrot.slane %v252, %v256
  %v259 = vadd.f32 %v249, %v257
  %v260 = vmax.f32 %v259, 0.0
  %v261 = vld [vmem:[%s5] sm:$0xff]
  %v262 = vld [vmem:[%s5 + $0x8] sm:$0xff]
  %v263 = vld [vmem:[%s5 + $0x10] sm:$0xff]
  %v264 = vld [vmem:[%s5 + $0x18] sm:$0xff]
  %v265 = vld [vmem:[%s5 + $0x20] sm:$0xff]
  %v266 = vld [vmem:[%s5 + $0x28] sm:$0xff]
  %v267 = vld [vmem:[%s5 + $0x30] sm:$0xff]
  %v268 = vld [vmem:[%s5 + $0x38] sm:$0xff]
  %v269 = vld [vmem:[%s5 + $0x40] sm:$0xff]
  %v270 = vld [vmem:[%s5 + $0x48] sm:$0xff]
  %v271 = vld [vmem:[%s5 + $0x50] sm:$0xff]
  %v272 = vld [vmem:[%s5 + $0x58] sm:$0xff]
  %v273 = vld [vmem:[%s5 + $0x60] sm:$0xff]
  %v274 = vld [vmem:[%s5 + $0x68] sm:$0xff]
  %v275 = vld [vmem:[%s5 + $0x70] sm:$0xff]
  %v276 = vld [vmem:[%s5 + $0x78] sm:$0xff]
  %v277 = vld [vmem:[%s6] sm:$0x1]
  %v279 = vlaneseq
  %v280 = vshrl.u32 %v279, 7
  %v281 = vsub.s32 0, %v280
  %v282 = vrot.slane %v277, %v281
  %284 = vmatprep.subr.mxu0 0.0
  %285 = vmatpush1.msra.mxu0 %v261
  %286 = vmatprep.subr.mxu0 0.0
  %287 = vmatpush1.msra.mxu0 %v262
  %288 = vmatprep.subr.mxu0 0.0
  %289 = vmatpush1.msra.mxu0 %v263
  %290 = vmatprep.subr.mxu0 0.0
  %291 = vmatpush1.msra.mxu0 %v264
  %292 = vmatprep.subr.mxu0 0.0
  %293 = vmatpush1.msra.mxu0 %v265
  %294 = vmatprep.subr.mxu0 0.0
  %295 = vmatpush1.msra.mxu0 %v266
  %296 = vmatprep.subr.mxu0 0.0
  %297 = vmatpush1.msra.mxu0 %v267
  %298 = vmatprep.subr.mxu0 0.0
  %299 = vmatpush1.msra.mxu0 %v268
  %300 = vmatprep.subr.mxu0 0.0
  %301 = vmatpush1.msra.mxu0 %v269
  %302 = vmatprep.subr.mxu0 0.0
  %303 = vmatpush1.msra.mxu0 %v270
  %304 = vmatprep.subr.mxu0 0.0
  %305 = vmatpush1.msra.mxu0 %v271
  %306 = vmatprep.subr.mxu0 0.0
  %307 = vmatpush1.msra.mxu0 %v272
  %308 = vmatprep.subr.mxu0 0.0
  %309 = vmatpush1.msra.mxu0 %v273
  %310 = vmatprep.subr.mxu0 0.0
  %311 = vmatpush1.msra.mxu0 %v274
  %312 = vmatprep.subr.mxu0 0.0
  %313 = vmatpush1.msra.mxu0 %v275
  %314 = vmatprep.subr.mxu0 0.0
  %315 = vmatpush1.msra.mxu0 %v276
  %316 = vmatprep.subr.mxu0 0.0
  %317 = vmatpush1.msra.mxu0 0.0
  %318 = vmatprep.subr.mxu0 0.0
  %319 = vmatpush1.msra.mxu0 0.0
  %320 = vmatprep.subr.mxu0 0.0
  %321 = vmatpush1.msra.mxu0 0.0
  %322 = vmatprep.subr.mxu0 0.0
  %323 = vmatpush1.msra.mxu0 0.0
  %324 = vmatprep.subr.mxu0 0.0
  %325 = vmatpush1.msra.mxu0 0.0
  %326 = vmatprep.subr.mxu0 0.0
  %327 = vmatpush1.msra.mxu0 0.0
  %328 = vmatprep.subr.mxu0 0.0
  %329 = vmatpush1.msra.mxu0 0.0
  %330 = vmatprep.subr.mxu0 0.0
  %331 = vmatpush1.msra.mxu0 0.0
  %332 = vmatprep.subr.mxu0 0.0
  %333 = vmatpush1.msra.mxu0 0.0
  %334 = vmatprep.subr.mxu0 0.0
  %335 = vmatpush1.msra.mxu0 0.0
  %336 = vmatprep.subr.mxu0 0.0
  %337 = vmatpush1.msra.mxu0 0.0
  %338 = vmatprep.subr.mxu0 0.0
  %339 = vmatpush1.msra.mxu0 0.0
  %340 = vmatprep.subr.mxu0 0.0
  %341 = vmatpush1.msra.mxu0 0.0
  %342 = vmatprep.subr.mxu0 0.0
  %343 = vmatpush1.msra.mxu0 0.0
  %344 = vmatprep.subr.mxu0 0.0
  %345 = vmatpush1.msra.mxu0 0.0
  %346 = vmatprep.subr.mxu0 0.0
  %347 = vmatpush1.msra.mxu0 0.0
  %348 = vmatprep.mubr.f32.mxu0 0.0
  %349 = vmatmul.mubr.f32.gmra.mrb[0].mxu0 %v260
  %v350 = vpop.f32.mrb[0].mxu0
  %v351 = vadd.f32 %v282, %v350
  %v352 = vpop.f32.mrb[0].mxu0
  %353 = vdwg.mxu0
  %v354 = vmax.f32 %v351, 0.0
  %v355 = vld [vmem:[%s7] sm:$0xff]
  %v356 = vld [vmem:[%s7 + $0x8] sm:$0xff]
  %v357 = vld [vmem:[%s7 + $0x10] sm:$0xff]
  %v358 = vld [vmem:[%s7 + $0x18] sm:$0xff]
  %v359 = vld [vmem:[%s7 + $0x20] sm:$0xff]
  %v360 = vld [vmem:[%s7 + $0x28] sm:$0xff]
  %v361 = vld [vmem:[%s7 + $0x30] sm:$0xff]
  %v362 = vld [vmem:[%s7 + $0x38] sm:$0xff]
  %v363 = vld [vmem:[%s7 + $0x40] sm:$0xff]
  %v364 = vld [vmem:[%s7 + $0x48] sm:$0xff]
  %v365 = vld [vmem:[%s7 + $0x50] sm:$0xff]
  %v366 = vld [vmem:[%s7 + $0x58] sm:$0xff]
  %v367 = vld [vmem:[%s7 + $0x60] sm:$0xff]
  %v368 = vld [vmem:[%s7 + $0x68] sm:$0xff]
  %v369 = vld [vmem:[%s7 + $0x70] sm:$0xff]
  %v370 = vld [vmem:[%s7 + $0x78] sm:$0xff]
  %v371 = vld [vmem:[%s8] sm:$0x1]
  %v373 = vlaneseq
  %v374 = vshrl.u32 %v373, 7
  %v375 = vsub.s32 0, %v374
  %v376 = vrot.slane %v371, %v375
  %378 = vmatprep.subr.mxu0 0.0
  %379 = vmatpush1.msra.mxu0 %v355
  %380 = vmatprep.subr.mxu0 0.0
  %381 = vmatpush1.msra.mxu0 %v356
  %382 = vmatprep.subr.mxu0 0.0
  %383 = vmatpush1.msra.mxu0 %v357
  %384 = vmatprep.subr.mxu0 0.0
  %385 = vmatpush1.msra.mxu0 %v358
  %386 = vmatprep.subr.mxu0 0.0
  %387 = vmatpush1.msra.mxu0 %v359
  %388 = vmatprep.subr.mxu0 0.0
  %389 = vmatpush1.msra.mxu0 %v360
  %390 = vmatprep.subr.mxu0 0.0
  %391 = vmatpush1.msra.mxu0 %v361
  %392 = vmatprep.subr.mxu0 0.0
  %393 = vmatpush1.msra.mxu0 %v362
  %394 = vmatprep.subr.mxu0 0.0
  %395 = vmatpush1.msra.mxu0 %v363
  %396 = vmatprep.subr.mxu0 0.0
  %397 = vmatpush1.msra.mxu0 %v364
  %398 = vmatprep.subr.mxu0 0.0
  %399 = vmatpush1.msra.mxu0 %v365
  %400 = vmatprep.subr.mxu0 0.0
  %401 = vmatpush1.msra.mxu0 %v366
  %402 = vmatprep.subr.mxu0 0.0
  %403 = vmatpush1.msra.mxu0 %v367
  %404 = vmatprep.subr.mxu0 0.0
  %405 = vmatpush1.msra.mxu0 %v368
  %406 = vmatprep.subr.mxu0 0.0
  %407 = vmatpush1.msra.mxu0 %v369
  %408 = vmatprep.subr.mxu0 0.0
  %409 = vmatpush1.msra.mxu0 %v370
  %410 = vmatprep.subr.mxu0 0.0
  %411 = vmatpush1.msra.mxu0 0.0
  %412 = vmatprep.subr.mxu0 0.0
  %413 = vmatpush1.msra.mxu0 0.0
  %414 = vmatprep.subr.mxu0 0.0
  %415 = vmatpush1.msra.mxu0 0.0
  %416 = vmatprep.subr.mxu0 0.0
  %417 = vmatpush1.msra.mxu0 0.0
  %418 = vmatprep.subr.mxu0 0.0
  %419 = vmatpush1.msra.mxu0 0.0
  %420 = vmatprep.subr.mxu0 0.0
  %421 = vmatpush1.msra.mxu0 0.0
  %422 = vmatprep.subr.mxu0 0.0
  %423 = vmatpush1.msra.mxu0 0.0
  %424 = vmatprep.subr.mxu0 0.0
  %425 = vmatpush1.msra.mxu0 0.0
  %426 = vmatprep.subr.mxu0 0.0
  %427 = vmatpush1.msra.mxu0 0.0
  %428 = vmatprep.subr.mxu0 0.0
  %429 = vmatpush1.msra.mxu0 0.0
  %430 = vmatprep.subr.mxu0 0.0
  %431 = vmatpush1.msra.mxu0 0.0
  %432 = vmatprep.subr.mxu0 0.0
  %433 = vmatpush1.msra.mxu0 0.0
  %434 = vmatprep.subr.mxu0 0.0
  %435 = vmatpush1.msra.mxu0 0.0
  %436 = vmatprep.subr.mxu0 0.0
  %437 = vmatpush1.msra.mxu0 0.0
  %438 = vmatprep.subr.mxu0 0.0
  %439 = vmatpush1.msra.mxu0 0.0
  %440 = vmatprep.subr.mxu0 0.0
  %441 = vmatpush1.msra.mxu0 0.0
  %442 = vmatprep.mubr.f32.mxu0 0.0
  %443 = vmatmul.mubr.f32.gmra.mrb[0].mxu0 %v354
  %v444 = vpop.f32.mrb[0].mxu0
  %v445 = vadd.f32 %v376, %v444
  %v446 = vpop.f32.mrb[0].mxu0
  %447 = vdwg.mxu0
  %448 = vst [vmem:[%s9] sm:$0xff] %v445
  // Predicated region
  $region38: #{co2_predictor_forward.1} parent=0 // pred_check
    _
  $region39: #{co2_predictor_forward.1} parent=0 // pred_check_branch
    %450 = sbr.rel (0) target = $region41
  $region40: #{co2_predictor_forward.1} parent=0 // pred_region
    _
  $region41: #{co2_predictor_forward.1} parent=0 // pred_fallthru
    _
  // Predicated region
  $region42: #{co2_predictor_forward.1} parent=0 // pred_check
    _
  $region43: #{co2_predictor_forward.1} parent=0 // pred_check_branch
    %452 = sbr.rel (0) target = $region45
  $region44: #{co2_predictor_forward.1} parent=0 // pred_region
    _
  $region45: #{co2_predictor_forward.1} parent=0 // pred_fallthru
    _

</llo_original>
